<compile_context>
chip_gen: v5e
topology: v5e:2x2
jax: 0.10.0
libtpu: 0.0.40
codegen_flags: <defaults>
</compile_context>

<pallas_src>
import functools

import jax
import jax.numpy as jnp
from jax.experimental import pallas as pl
from jax.experimental.pallas import tpu as pltpu

_MIB = 1024 * 1024


def _round_up(x, m):
    return (x + m - 1) // m * m


def _sublane(itemsize):
    return {4: 8, 2: 16, 1: 32}.get(itemsize, 8)


def _vmem_params():
    """Generation-aware (input_budget, vmem_limit_bytes, small_vmem)."""
    try:
        cap = int(pltpu.get_tpu_info().vmem_capacity_bytes)
    except Exception:  # unknown platform / emulator: stay conservative
        cap = 0
    if cap >= 100 * _MIB:          # 128 MiB VMEM parts (v5e / v6e)
        return 80 * _MIB, 100 * _MIB, False
    if cap >= 48 * _MIB:           # 64 MiB per-TensorCore parts (v7x)
        return 36 * _MIB, 54 * _MIB, True
    return 24 * _MIB, 40 * _MIB, False


def _choose_ts(S, D, C, pred_dtype, pos_dtype, budget, ts_override=None):
    """Pick sequence-tile rows: sized by HBM bytes/step under a VMEM budget."""
    pred_isz = jnp.dtype(pred_dtype).itemsize
    pos_isz = jnp.dtype(pos_dtype).itemsize
    d_eff = _round_up(max(D, 1), 128)          # lane-padded feature width
    c8 = _round_up(max(C, 1), 8)

    if ts_override is not None:
        ts = ts_override                       # testing knob (multiple of 128)
    else:
        # TS-independent VMEM: positions (double-buffered), out blocks,
        # pos_sq scratch + cross result, plus headroom.
        pos_buf = _round_up(c8, _sublane(pos_isz)) * d_eff * pos_isz
        fixed = 2 * pos_buf + 2 * (8 * 128 * 4) + 2 * (c8 * 128 * 4) + 2 * _MIB
        # Per-sequence-row VMEM:
        #   pred input (double-buffered, native dtype)
        #   labels lane-dense (8 sublanes x 4 B, double-buffered)
        #   two f32 (TS, d_eff) intermediates (masked upcast pred, pred*pred)
        #   one-hot + lane iota (c8, TS)
        per_row = (2 * d_eff * pred_isz + 2 * 8 * 4
                   + 2 * d_eff * 4 + 2 * c8 * 4)
        cap_rows = max(budget - fixed, 0) // per_row
        # Target >= ~4 MiB of *actual* HBM prediction bytes per grid step so the
        # pipeline is bandwidth-bound, not per-step-overhead-bound.
        target_rows = pl.cdiv(4 * _MIB, max(D * pred_isz, 1))
        ts = min(cap_rows, max(target_rows, 1024), 32768)
        ts = max((ts // 128) * 128, 128)
    if S <= ts:
        return S, 1                            # single tile covers the sequence
    return ts, pl.cdiv(S, ts)


def _mse_partial_kernel(pred_ref, pos_ref, lab_ref, out_ref, pos_sq_ref,
                        *, ts, nsh, seq_len):
    p = pl.program_id(0)                       # sequence-split axis (v7x cores)
    s = pl.program_id(2)                       # sequence-tile (reduction) axis
    tile_idx = p * nsh + s
    row_start = tile_idx * ts
    rem = seq_len - row_start                  # valid rows in this tile (<=0 ok)

    pos = pos_ref[0].astype(jnp.float32)       # (C, D)

    @pl.when(s == 0)
    def _():
        out_ref[...] = jnp.zeros_like(out_ref)
        # positions-only work hoisted out of the per-tile loop
        pos_sq_ref[...] = jnp.sum(pos * pos, axis=1, keepdims=True)

    pred = pred_ref[0].astype(jnp.float32)     # (TS, D), streamed natively
    labels = lab_ref[0]                        # (1, TS) int32, lane-dense

    TS = pred.shape[0]
    C = pos.shape[0]

    # Mask rows past the end of the sequence: partial-block buffer contents are
    # undefined (possibly NaN), so zero them before ANY use (sum and MXU).
    row_ids = jax.lax.broadcasted_iota(jnp.int32, (TS, 1), 0)
    pred = jnp.where(row_ids < rem, pred, 0.0)

    # Transposed one-hot, lane-dense, with the same validity mask on lanes so
    # garbage labels in the tail cannot bump cluster counts.
    lane_ids = jax.lax.broadcasted_iota(jnp.int32, (1, TS), 1)
    cluster_ids = jax.lax.broadcasted_iota(jnp.int32, (C, TS), 0)
    onehot_t = jnp.logical_and(labels == cluster_ids,
                               lane_ids < rem).astype(jnp.float32)   # (C, TS)

    # sum_i ||pred_i||^2
    pred_sq = jnp.sum(pred * pred)

    # Cross term via small-output MXU matmul: (C, TS) @ (TS, D) -> (C, D).
    cross = jnp.dot(onehot_t, pred, preferred_element_type=jnp.float32,
                    precision=jax.lax.Precision.HIGHEST)
    cross_term = jnp.sum(cross * pos)

    # sum_i ||center(label_i)||^2 = sum_c count_c * ||pos_c||^2.
    counts = jnp.sum(onehot_t, axis=1, keepdims=True)                # (C, 1)
    center_term = jnp.sum(counts * pos_sq_ref[...])

    out_ref[...] += pred_sq - 2.0 * cross_term + center_term


def _per_batch_sq_sum(predictions, positions, labels, ts_override=None):
    B, S, D = predictions.shape
    C = positions.shape[1]

    budget, vmem_limit, small_vmem = _vmem_params()
    TS, n_s = _choose_ts(S, D, C, predictions.dtype, positions.dtype,
                         budget, ts_override)

    # When B alone cannot keep both v7x TensorCores busy, split the sequence
    # reduction across a leading parallel axis (harmless on 1-TC chips).
    nsplit = 2 if (B == 1 and n_s >= 2) else 1
    nsh = pl.cdiv(n_s, nsplit)

    labels3 = labels.astype(jnp.int32).reshape(B, 1, S)

    def seq_block(p, s):
        # Clamp so the last (possibly duplicated) block never starts out of
        # bounds; duplicated blocks are fully masked inside the kernel.
        return jnp.minimum(p * nsh + s, n_s - 1)

    pos_spec_kwargs = {}
    if small_vmem:
        # positions are reused across the whole sequence axis; a second buffer
        # is pointless and VMEM is tight on v7x.
        pos_spec_kwargs["pipeline_mode"] = pl.Buffered(1)

    kernel = functools.partial(_mse_partial_kernel, ts=TS, nsh=nsh, seq_len=S)

    out = pl.pallas_call(
        kernel,
        out_shape=jax.ShapeDtypeStruct((nsplit, B, 1, 128), jnp.float32),
        grid_spec=pltpu.PrefetchScalarGridSpec(
            num_scalar_prefetch=0,
            grid=(nsplit, B, nsh),
            in_specs=[
                pl.BlockSpec((1, TS, D), lambda p, b, s: (b, seq_block(p, s), 0)),
                pl.BlockSpec((1, C, D), lambda p, b, s: (b, 0, 0),
                             **pos_spec_kwargs),
                pl.BlockSpec((1, 1, TS), lambda p, b, s: (b, 0, seq_block(p, s))),
            ],
            out_specs=pl.BlockSpec((1, 1, 1, 128), lambda p, b, s: (p, b, 0, 0)),
            scratch_shapes=[pltpu.VMEM((C, 1), jnp.float32)],
        ),
        compiler_params=pltpu.CompilerParams(
            dimension_semantics=("parallel", "parallel", "arbitrary"),
            vmem_limit_bytes=vmem_limit,
        ),
    )(predictions, positions, labels3)
    # Sum the split-axis partials -> per-batch squared-error sums (B,).
    return jnp.sum(out[:, :, 0, 0], axis=0)


@functools.partial(jax.jit, static_argnames=("reduction", "_ts_override"))
def mse_loss(predictions, labels, positions, reduction="mean", _ts_override=None):
    """JAX/Pallas equivalent of the PyTorch MSELoss.forward."""
    B, S, _ = predictions.shape
    per_batch = _per_batch_sq_sum(predictions, positions, labels, _ts_override)
    sq_sum = jnp.sum(per_batch)
    # F.mse_loss mean over B*S*D elements, then * D  ==  sq_sum / (B*S)
    base_loss = sq_sum / jnp.float32(B * S)

    if reduction == "mean":
        return base_loss
    elif reduction == "sum":
        return base_loss * jnp.float32(B)
    elif reduction == "none":
        # Matches the PyTorch reference: the *global* base loss broadcast to (B,).
        return jnp.full((B,), base_loss, dtype=jnp.float32)
    else:
        raise ValueError(f"Invalid reduction: {reduction}")


class MSELoss:
    def __init__(self, reduction="mean"):
        self.reduction = reduction

    def __call__(self, predictions, labels, positions):
        return mse_loss(predictions, labels, positions, reduction=self.reduction)


def _reference(predictions, labels, positions):
    predictions = predictions.astype(jnp.float32)
    positions = positions.astype(jnp.float32)
    true_centers = jnp.take_along_axis(positions, labels[..., None], axis=1)
    return jnp.mean((predictions - true_centers) ** 2) * predictions.shape[-1]


if __name__ == "__main__":
    keys = jax.random.split(jax.random.PRNGKey(0), 9)

    # 1) Primary small test (module-consistent shapes), all reductions.
    B, S, C, D = 2, 8, 4, 32
    predictions = jax.random.normal(keys[0], (B, S, D), dtype=jnp.float32)
    positions = jax.random.normal(keys[1], (B, C, D), dtype=jnp.float32)
    labels = jax.random.randint(keys[2], (B, S), 0, C, dtype=jnp.int32)

    loss = jax.block_until_ready(MSELoss("mean")(predictions, labels, positions))
    ref = _reference(predictions, labels, positions)
    assert jnp.allclose(loss, ref, rtol=2e-4, atol=1e-3), (loss, ref)

    s_out = jax.block_until_ready(MSELoss("sum")(predictions, labels, positions))
    n_out = jax.block_until_ready(MSELoss("none")(predictions, labels, positions))
    assert jnp.allclose(s_out, ref * B, rtol=2e-4, atol=1e-3)
    assert n_out.shape == (B,) and jnp.allclose(n_out, ref, rtol=2e-4, atol=1e-3)

    # 2) S not a multiple of 8 (single full-sequence tile, no padding anywhere).
    B2, S2, C2, D2 = 2, 13, 4, 32
    p2 = jax.random.normal(keys[3], (B2, S2, D2), dtype=jnp.float32)
    q2 = jax.random.normal(keys[4], (B2, C2, D2), dtype=jnp.float32)
    l2 = jax.random.randint(keys[5], (B2, S2), 0, C2, dtype=jnp.int32)
    loss2 = jax.block_until_ready(MSELoss("mean")(p2, l2, q2))
    ref2 = _reference(p2, l2, q2)
    assert jnp.allclose(loss2, ref2, rtol=2e-4, atol=1e-3), (loss2, ref2)

    # 3) Ragged multi-tile path + B==1 sequence split (forced small tile so the
    #    in-kernel tail masking and the clamped split index_map are exercised).
    B3, S3, C3, D3 = 1, 300, 5, 32
    p3 = jax.random.normal(keys[6], (B3, S3, D3), dtype=jnp.float32)
    q3 = jax.random.normal(keys[7], (B3, C3, D3), dtype=jnp.float32)
    l3 = jax.random.randint(keys[8], (B3, S3), 0, C3, dtype=jnp.int32)
    loss3 = jax.block_until_ready(
        mse_loss(p3, l3, q3, reduction="mean", _ts_override=128))
    ref3 = _reference(p3, l3, q3)
    assert jnp.allclose(loss3, ref3, rtol=2e-4, atol=1e-3), (loss3, ref3)

    # 4) bf16 inputs streamed in their native dtype (no wrapper-side upcast).
    p4 = p2.astype(jnp.bfloat16)
    q4 = q2.astype(jnp.bfloat16)
    loss4 = jax.block_until_ready(MSELoss("mean")(p4, l2, q4))
    ref4 = _reference(p4, l2, q4)
    assert jnp.allclose(loss4, ref4, rtol=1e-3, atol=1e-2), (loss4, ref4)

    print("KERNEL_OK")
</pallas_src>

<mosaic_0001>
module attributes {stable_mosaic.version = 11 : i64} {
  func.func @_mse_partial_kernel(%arg0: i32, %arg1: i32, %arg2: i32, %arg3: memref<1x8x32xf32, #tpu.memory_space<vmem>>, %arg4: memref<1x4x32xf32, #tpu.memory_space<vmem>>, %arg5: memref<1x1x8xi32, #tpu.memory_space<vmem>>, %arg6: memref<1x1x1x128xf32, #tpu.memory_space<vmem>>, %arg7: memref<4x1xf32, #tpu.memory_space<vmem>>) attributes {dimension_semantics = [#tpu.dimension_semantics<parallel>, #tpu.dimension_semantics<parallel>, #tpu.dimension_semantics<arbitrary>], iteration_bounds = array<i64: 1, 2, 1>, scalar_prefetch = 0 : i64, scratch_operands = 1 : i64, tpu.core_type = #tpu.core_type<tc>, window_params = [{transform_indices = @transform_0, window_bounds = array<i64: 1, 8, 32>}, {transform_indices = @transform_1, window_bounds = array<i64: 1, 4, 32>}, {transform_indices = @transform_2, window_bounds = array<i64: 1, 1, 8>}, {transform_indices = @transform_3, window_bounds = array<i64: 1, 1, 1, 128>}]} {
    %c1_i32 = arith.constant 1 : i32
    %0 = arith.muli %arg0, %c1_i32 : i32
    %1 = arith.addi %0, %arg2 : i32
    %c8_i32 = arith.constant 8 : i32
    %2 = arith.muli %1, %c8_i32 : i32
    %c8_i32_0 = arith.constant 8 : i32
    %3 = arith.subi %c8_i32_0, %2 : i32
    %c0 = arith.constant 0 : index
    %c0_1 = arith.constant 0 : index
    %c0_2 = arith.constant 0 : index
    %4 = vector.load %arg4[%c0, %c0_1, %c0_2] : memref<1x4x32xf32, #tpu.memory_space<vmem>>, vector<1x4x32xf32>
    %5 = vector.shape_cast %4 : vector<1x4x32xf32> to vector<4x32xf32>
    %c0_i32 = arith.constant 0 : i32
    %6 = arith.cmpi eq, %arg2, %c0_i32 : i32
    %7 = arith.extui %6 : i1 to i32
    %c0_i32_3 = arith.constant 0 : i32
    %8 = arith.cmpi ne, %7, %c0_i32_3 : i32
    scf.if %8 {
      %cst_26 = arith.constant 0.000000e+00 : f32
      %56 = vector.broadcast %cst_26 : f32 to vector<1x1x1x128xf32>
      %c0_27 = arith.constant 0 : index
      %c0_28 = arith.constant 0 : index
      %c0_29 = arith.constant 0 : index
      %c0_30 = arith.constant 0 : index
      %57 = vector.load %arg6[%c0_27, %c0_28, %c0_29, %c0_30] : memref<1x1x1x128xf32, #tpu.memory_space<vmem>>, vector<1x1x1x128xf32>
      tpu.vector_store %arg6[%c0_27, %c0_28, %c0_29, %c0_30], %56 {strides = array<i32>} : memref<1x1x1x128xf32, #tpu.memory_space<vmem>>, vector<1x1x1x128xf32>,
      %58 = arith.mulf %5, %5 : vector<4x32xf32>
      %cst_31 = arith.constant dense<0.000000e+00> : vector<4xf32>
      %59 = vector.multi_reduction <add>, %58, %cst_31 [1] : vector<4x32xf32> to vector<4xf32>
      %60 = vector.shape_cast %59 : vector<4xf32> to vector<4x1xf32>
      %c0_32 = arith.constant 0 : index
      %c0_33 = arith.constant 0 : index
      %61 = vector.load %arg7[%c0_32, %c0_33] : memref<4x1xf32, #tpu.memory_space<vmem>>, vector<4x1xf32>
      tpu.vector_store %arg7[%c0_32, %c0_33], %60 {strides = array<i32>} : memref<4x1xf32, #tpu.memory_space<vmem>>, vector<4x1xf32>,
    } else {
    }
    %c0_4 = arith.constant 0 : index
    %c0_5 = arith.constant 0 : index
    %c0_6 = arith.constant 0 : index
    %9 = vector.load %arg3[%c0_4, %c0_5, %c0_6] : memref<1x8x32xf32, #tpu.memory_space<vmem>>, vector<1x8x32xf32>
    %10 = vector.shape_cast %9 : vector<1x8x32xf32> to vector<8x32xf32>
    %c0_7 = arith.constant 0 : index
    %c0_8 = arith.constant 0 : index
    %c0_9 = arith.constant 0 : index
    %11 = vector.load %arg5[%c0_7, %c0_8, %c0_9] : memref<1x1x8xi32, #tpu.memory_space<vmem>>, vector<1x1x8xi32>
    %12 = vector.shape_cast %11 : vector<1x1x8xi32> to vector<1x8xi32>
    %13 = tpu.iota {dimensions = array<i32: 0>} : vector<8x1xi32>
    %14 = vector.broadcast %3 : i32 to vector<8x1xi32>
    %15 = arith.cmpi slt, %13, %14 : vector<8x1xi32>
    %cst = arith.constant 0.000000e+00 : f32
    %16 = vector.shape_cast %15 : vector<8x1xi1> to vector<8x1xi1>
    %17 = vector.broadcast %16 : vector<8x1xi1> to vector<8x32xi1>
    %18 = vector.broadcast %cst : f32 to vector<8x32xf32>
    %19 = arith.select %17, %10, %18 : vector<8x32xi1>, vector<8x32xf32>
    %20 = tpu.iota {dimensions = array<i32: 1>} : vector<1x8xi32>
    %21 = tpu.iota {dimensions = array<i32: 0>} : vector<4x8xi32>
    %22 = vector.broadcast %12 : vector<1x8xi32> to vector<4x8xi32>
    %23 = arith.cmpi eq, %22, %21 : vector<4x8xi32>
    %24 = vector.broadcast %3 : i32 to vector<1x8xi32>
    %25 = arith.cmpi slt, %20, %24 : vector<1x8xi32>
    %26 = vector.broadcast %25 : vector<1x8xi1> to vector<4x8xi1>
    %27 = arith.andi %23, %26 : vector<4x8xi1>
    %28 = arith.extui %27 : vector<4x8xi1> to vector<4x8xi32>
    %29 = arith.sitofp %28 : vector<4x8xi32> to vector<4x8xf32>
    %30 = arith.mulf %19, %19 : vector<8x32xf32>
    %31 = vector.shape_cast %30 : vector<8x32xf32> to vector<1x8x32xf32>
    %cst_10 = arith.constant dense<0.000000e+00> : vector<1xf32>
    %32 = vector.multi_reduction <add>, %31, %cst_10 [1, 2] : vector<1x8x32xf32> to vector<1xf32>
    %33 = vector.shape_cast %32 : vector<1xf32> to vector<1x1x1xf32>
    %34 = vector.extract %33[0, 0, 0] : f32 from vector<1x1x1xf32>
    %cst_11 = arith.constant dense<0.000000e+00> : vector<4x32xf32>
    %35 = tpu.matmul %29, %19, %cst_11 {dimension_numbers = #tpu.dot_dimension_numbers<[1], [0], [0], [1], [0, 0, 1, 1], [], []>, precision = #tpu.contract_precision<fp32>} : vector<4x8xf32>, vector<8x32xf32>, vector<4x32xf32> -> vector<4x32xf32>
    %36 = arith.mulf %35, %5 : vector<4x32xf32>
    %37 = vector.shape_cast %36 : vector<4x32xf32> to vector<1x4x32xf32>
    %cst_12 = arith.constant dense<0.000000e+00> : vector<1xf32>
    %38 = vector.multi_reduction <add>, %37, %cst_12 [1, 2] : vector<1x4x32xf32> to vector<1xf32>
    %39 = vector.shape_cast %38 : vector<1xf32> to vector<1x1x1xf32>
    %40 = vector.extract %39[0, 0, 0] : f32 from vector<1x1x1xf32>
    %cst_13 = arith.constant dense<0.000000e+00> : vector<4xf32>
    %41 = vector.multi_reduction <add>, %29, %cst_13 [1] : vector<4x8xf32> to vector<4xf32>
    %42 = vector.shape_cast %41 : vector<4xf32> to vector<4x1xf32>
    %c0_14 = arith.constant 0 : index
    %c0_15 = arith.constant 0 : index
    %43 = vector.load %arg7[%c0_14, %c0_15] : memref<4x1xf32, #tpu.memory_space<vmem>>, vector<4x1xf32>
    %44 = arith.mulf %42, %43 : vector<4x1xf32>
    %45 = vector.shape_cast %44 : vector<4x1xf32> to vector<1x4x1xf32>
    %cst_16 = arith.constant dense<0.000000e+00> : vector<1xf32>
    %46 = vector.multi_reduction <add>, %45, %cst_16 [1, 2] : vector<1x4x1xf32> to vector<1xf32>
    %47 = vector.shape_cast %46 : vector<1xf32> to vector<1x1x1xf32>
    %48 = vector.extract %47[0, 0, 0] : f32 from vector<1x1x1xf32>
    %c0_17 = arith.constant 0 : index
    %c0_18 = arith.constant 0 : index
    %c0_19 = arith.constant 0 : index
    %c0_20 = arith.constant 0 : index
    %49 = vector.load %arg6[%c0_17, %c0_18, %c0_19, %c0_20] : memref<1x1x1x128xf32, #tpu.memory_space<vmem>>, vector<1x1x1x128xf32>
    %cst_21 = arith.constant 2.000000e+00 : f32
    %50 = arith.mulf %cst_21, %40 : f32
    %51 = arith.subf %34, %50 : f32
    %52 = arith.addf %51, %48 : f32
    %53 = vector.broadcast %52 : f32 to vector<1x1x1x128xf32>
    %54 = arith.addf %49, %53 : vector<1x1x1x128xf32>
    %c0_22 = arith.constant 0 : index
    %c0_23 = arith.constant 0 : index
    %c0_24 = arith.constant 0 : index
    %c0_25 = arith.constant 0 : index
    %55 = vector.load %arg6[%c0_22, %c0_23, %c0_24, %c0_25] : memref<1x1x1x128xf32, #tpu.memory_space<vmem>>, vector<1x1x1x128xf32>
    tpu.vector_store %arg6[%c0_22, %c0_23, %c0_24, %c0_25], %54 {strides = array<i32>} : memref<1x1x1x128xf32, #tpu.memory_space<vmem>>, vector<1x1x1x128xf32>,
    return
  }
  func.func @transform_0(%arg0: i32, %arg1: i32, %arg2: i32) -> (i32, i32, i32) {
    %c1_i32 = arith.constant 1 : i32
    %0 = arith.muli %arg0, %c1_i32 : i32
    %1 = arith.addi %0, %arg2 : i32
    %c0_i32 = arith.constant 0 : i32
    %2 = arith.minsi %1, %c0_i32 : i32
    %c0_i32_0 = arith.constant 0 : i32
    %c0_i32_1 = arith.constant 0 : i32
    return %arg1, %2, %c0_i32_0 : i32, i32, i32
  }
  func.func @transform_1(%arg0: i32, %arg1: i32, %arg2: i32) -> (i32, i32, i32) {
    %c0_i32 = arith.constant 0 : i32
    %c0_i32_0 = arith.constant 0 : i32
    %c0_i32_1 = arith.constant 0 : i32
    return %arg1, %c0_i32, %c0_i32_0 : i32, i32, i32
  }
  func.func @transform_2(%arg0: i32, %arg1: i32, %arg2: i32) -> (i32, i32, i32) {
    %c1_i32 = arith.constant 1 : i32
    %0 = arith.muli %arg0, %c1_i32 : i32
    %1 = arith.addi %0, %arg2 : i32
    %c0_i32 = arith.constant 0 : i32
    %2 = arith.minsi %1, %c0_i32 : i32
    %c0_i32_0 = arith.constant 0 : i32
    %c0_i32_1 = arith.constant 0 : i32
    return %arg1, %c0_i32_0, %2 : i32, i32, i32
  }
  func.func @transform_3(%arg0: i32, %arg1: i32, %arg2: i32) -> (i32, i32, i32, i32) {
    %c0_i32 = arith.constant 0 : i32
    %c0_i32_0 = arith.constant 0 : i32
    %c0_i32_1 = arith.constant 0 : i32
    return %arg0, %arg1, %c0_i32, %c0_i32_0 : i32, i32, i32, i32
  }
}

</mosaic_0001>

<llo_original>
// kernel: mse_loss.1
$region0: #{mse_loss.1}
  #allocation0 [shape = 'u32[]', space=smem, size = 0x4, offset = 0x4, fixed_abs, tag = 'smem constant byte address 0x4 - core index']
  #allocation1 [shape = 'u32[72,128]{1,0:T(1,128)}', space=vmem, size = 0x9000, scoped, tag = 'internal scratch']
  #allocation2 [shape = 'f32[4,1]{1,0:T(4,128)}', space=vmem, size = 0x800, scoped, tag = 'scratch operand']
  %s0 = inlined_call_operand.hbm [shape: f32[2,8,32], index: 0, kind: input, shape index: {}]
  %s1 = inlined_call_operand.hbm [shape: f32[2,4,32], index: 1, kind: input, shape index: {}]
  %s2 = inlined_call_operand.hbm [shape: s32[2,1,8], index: 2, kind: input, shape index: {}]
  %s3 = inlined_call_operand.vmem [shape: f32[1,2,1,128], index: 3, kind: output, shape index: {}]
  %s4 = sld [smem:[#allocation0]]
  $region61: #{mse_loss.1} parent=0
    _
  %s6 = ssub.s32 1, %s4
  %s7 = scalar_select 0, %s6, %s4
  $region1: #{mse_loss.1} parent=0
    #allocation3 [shape = 'u8[8192]{0}', space=vmem, size = 0x2000, scoped, tag = 'input window, operand 0']
    #allocation4 [shape = 's32[2]{0}', space=sflag, size = 0x8, scoped, tag = 'scoped memory for mse_loss.1']
    #allocation5 [shape = 'u8[4096]{0}', space=vmem, size = 0x1000, scoped, tag = 'input window, operand 1']
    #allocation6 [shape = 's32[2]{0}', space=sflag, size = 0x8, scoped, tag = 'scoped memory for mse_loss.1']
    #allocation7 [shape = 'u8[1024]{0}', space=vmem, size = 0x400, scoped, tag = 'input window, operand 2']
    %8 = vsyncpa [#allocation4], 0
    %s9 = scalar_lea.sflag [#allocation4], 1
    %10 = vsyncpa %s9, 0
    %11 = vsyncpa [#allocation6], 0
    %s12 = scalar_lea.sflag [#allocation6], 1
    %13 = vsyncpa %s12, 0
    loop: start=0, step=1, limit=4
    $region2: #{mse_loss.1} parent=1 // loop_pre_header
      _
    $region3: #{mse_loss.1} parent=1 // loop_header
      %s15 = sphi 0, %s19
      %p16 = scmp.ge.s32.totalorder %s15, 4
      %s22 = sphi 0, %s41
      %s23 = sphi 0, %s37
      %s24 = sphi 0, %s33
      %s25 = sphi 0, %s22
      %s26 = sphi 0, %s23
      %s27 = sphi 0, %s24
      %s28 = sphi 0, %s25
      %s29 = sphi 0, %s26
      %s30 = sphi 0, %s27
      %s52 = sphi 0, %s54
      %s55 = sphi 0, %s52
      %s56 = sphi 0, %s55
      %s72 = sphi 0, %s56
      %s78 = sphi 0, %s80
      %s81 = sphi 0, %s78
      %s82 = sphi 0, %s81
      %s98 = sphi 0, %s82
      %s112 = sphi 0, %s114
      %s115 = sphi 0, %s112
      %s116 = sphi 0, %s115
      %s132 = sphi 0, %s116
      %s140 = sphi 0, %s142
      %s143 = sphi 0, %s140
      %s144 = sphi 0, %s143
      %s160 = sphi 0, %s144
    $region4: #{mse_loss.1} parent=1 // loop_header_branch
      %18 = sbr.rel (%p16) target = $region8
    $region5: #{mse_loss.1} parent=1 // loop_body
      %s20 = ssub.s32 %s15, 1
      %s21 = ssub.s32 %s15, 2
      %s31 = sadd.s32 1, %s24
      %p32 = scmp.ge.s32.totalorder %s31, 1
      %s33 = scalar_select %p32, 0, %s31
      %s34 = sadd.s32 1, %s23
      %s35 = scalar_select %p32, %s34, %s23
      %p36 = scmp.ge.s32.totalorder %s35, 2
      %s37 = scalar_select %p36, 0, %s35
      %s38 = sadd.s32 1, %s22
      %s39 = scalar_select %p36, %s38, %s22
      %p40 = scmp.ge.s32.totalorder %s39, 1
      %s41 = scalar_select %p40, 0, %s39
      %s42 = sadd.s32 %s22, %s24
      %p43 = scmp.lt.s32.totalorder %s42, 0
      %s44 = scalar_select %p43, %s42, 0
      %s45 = sadd.s32 %s41, %s33
      %p46 = scmp.lt.s32.totalorder %s45, 0
      %s47 = scalar_select %p46, %s45, 0
      %s48 = ssub.s32 %s23, %s37
      %s49 = ssub.s32 %s44, %s47
      %s50 = sor.u32 %s48, %s49
      %p51 = scmp.eq.s32.totalorder %s50, 0
      %s53 = sadd.s32 %s52, 1
      %s54 = scalar_select %p51, %s52, %s53
      %p57 = pneg %p51
      %p58 = scmp.eq.s32.totalorder %s15, 1
      %p59 = por %p57, %p58
      %p60 = scmp.ne.s32.totalorder %s52, %s55
      %p61 = scmp.eq.s32.totalorder %s15, 0
      %p62 = por %p60, %p61
      %p63 = scmp.ne.s32.totalorder %s52, %s55
      %p64 = scmp.eq.s32.totalorder %s20, 1
      %p65 = por %p63, %p64
      %p66 = scmp.ne.s32.totalorder %s55, %s56
      %p67 = scmp.eq.s32.totalorder %s20, 0
      %p68 = por %p66, %p67
      %p69 = scmp.ne.s32.totalorder %s55, %s56
      %p70 = scmp.eq.s32.totalorder %s21, 1
      %p71 = por %p69, %p70
      %p73 = scmp.ne.s32.totalorder %s56, %s72
      %p74 = scmp.eq.s32.totalorder %s21, 0
      %p75 = por %p73, %p74
      %s76 = ssub.s32 %s23, %s37
      %p77 = scmp.eq.s32.totalorder %s76, 0
      %s79 = sadd.s32 %s78, 1
      %s80 = scalar_select %p77, %s78, %s79
      %p83 = pneg %p77
      %p84 = scmp.eq.s32.totalorder %s15, 1
      %p85 = por %p83, %p84
      %p86 = scmp.ne.s32.totalorder %s78, %s81
      %p87 = scmp.eq.s32.totalorder %s15, 0
      %p88 = por %p86, %p87
      %p89 = scmp.ne.s32.totalorder %s78, %s81
      %p90 = scmp.eq.s32.totalorder %s20, 1
      %p91 = por %p89, %p90
      %p92 = scmp.ne.s32.totalorder %s81, %s82
      %p93 = scmp.eq.s32.totalorder %s20, 0
      %p94 = por %p92, %p93
      %p95 = scmp.ne.s32.totalorder %s81, %s82
      %p96 = scmp.eq.s32.totalorder %s21, 1
      %p97 = por %p95, %p96
      %p99 = scmp.ne.s32.totalorder %s82, %s98
      %p100 = scmp.eq.s32.totalorder %s21, 0
      %p101 = por %p99, %p100
      %s102 = sadd.s32 %s22, %s24
      %p103 = scmp.lt.s32.totalorder %s102, 0
      %s104 = scalar_select %p103, %s102, 0
      %s105 = sadd.s32 %s41, %s33
      %p106 = scmp.lt.s32.totalorder %s105, 0
      %s107 = scalar_select %p106, %s105, 0
      %s108 = ssub.s32 %s23, %s37
      %s109 = ssub.s32 %s104, %s107
      %s110 = sor.u32 %s108, %s109
      %p111 = scmp.eq.s32.totalorder %s110, 0
      %s113 = sadd.s32 %s112, 1
      %s114 = scalar_select %p111, %s112, %s113
      %p117 = pneg %p111
      %p118 = scmp.eq.s32.totalorder %s15, 1
      %p119 = por %p117, %p118
      %p120 = scmp.ne.s32.totalorder %s112, %s115
      %p121 = scmp.eq.s32.totalorder %s15, 0
      %p122 = por %p120, %p121
      %p123 = scmp.ne.s32.totalorder %s112, %s115
      %p124 = scmp.eq.s32.totalorder %s20, 1
      %p125 = por %p123, %p124
      %p126 = scmp.ne.s32.totalorder %s115, %s116
      %p127 = scmp.eq.s32.totalorder %s20, 0
      %p128 = por %p126, %p127
      %p129 = scmp.ne.s32.totalorder %s115, %s116
      %p130 = scmp.eq.s32.totalorder %s21, 1
      %p131 = por %p129, %p130
      %p133 = scmp.ne.s32.totalorder %s116, %s132
      %p134 = scmp.eq.s32.totalorder %s21, 0
      %p135 = por %p133, %p134
      %s136 = ssub.s32 %s22, %s41
      %s137 = ssub.s32 %s23, %s37
      %s138 = sor.u32 %s136, %s137
      %p139 = scmp.eq.s32.totalorder %s138, 0
      %s141 = sadd.s32 %s140, 1
      %s142 = scalar_select %p139, %s140, %s141
      %p145 = pneg %p139
      %p146 = scmp.eq.s32.totalorder %s15, 1
      %p147 = por %p145, %p146
      %p148 = scmp.ne.s32.totalorder %s140, %s143
      %p149 = scmp.eq.s32.totalorder %s15, 0
      %p150 = por %p148, %p149
      %p151 = scmp.ne.s32.totalorder %s140, %s143
      %p152 = scmp.eq.s32.totalorder %s20, 1
      %p153 = por %p151, %p152
      %p154 = scmp.ne.s32.totalorder %s143, %s144
      %p155 = scmp.eq.s32.totalorder %s20, 0
      %p156 = por %p154, %p155
      %p157 = scmp.ne.s32.totalorder %s143, %s144
      %p158 = scmp.eq.s32.totalorder %s21, 1
      %p159 = por %p157, %p158
      %p161 = scmp.ne.s32.totalorder %s144, %s160
      %p162 = scmp.eq.s32.totalorder %s21, 0
      %p163 = por %p161, %p162
      %p164 = scmp.le.s32.totalorder 1, %s15
      %p165 = scmp.lt.s32.totalorder %s15, 3
      %p166 = pnand %p164, %p165
      %p167 = pneg %p166
      // Predicated region
      $region9: #{mse_loss.1} parent=5 // pred_check
        _
      $region10: #{mse_loss.1} parent=5 // pred_check_branch
        %169 = sbr.rel (%p166) target = $region12
      $region11: #{mse_loss.1} parent=5 // pred_region
        %s170 = ssub.s32 %s15, 1
      $region12: #{mse_loss.1} parent=5 // pred_fallthru
        _
      %p171 = scmp.lt.s32.totalorder %s15, 2
      // Predicated region
      $region13: #{mse_loss.1} parent=5 // pred_check
        %p172 = pneg %p171
      $region14: #{mse_loss.1} parent=5 // pred_check_branch
        %174 = sbr.rel (%p172) target = $region16
      $region15: #{mse_loss.1} parent=5 // pred_region
        // Predicated region
        $region17: #{mse_loss.1} parent=15 // pred_check
          %p175 = pneg %p62
        $region18: #{mse_loss.1} parent=15 // pred_check_branch
          %177 = sbr.rel (%p175) target = $region20
        $region19: #{mse_loss.1} parent=15 // pred_region
          %s178 = sand.u32 %s52, 1
          %s179 = scalar_lea.sflag [#allocation4], %s178
          %s180 = sand.u32 %s52, 1
          %s181 = smul.addr %s180, 8
          %s182 = scalar_lea.vmem [#allocation3], %s181
          %s183 = sadd.s32 %s22, %s24
          %p184 = scmp.lt.s32.totalorder %s183, 0
          %s185 = scalar_select %p184, %s183, 0
          %187 = vsyncadd %s179, 0
          %s188 = sadd.s32 %s185, %s23
          %s189 = smul.addr %s188, 8
          %s190 = scalar_lea.hbm %s0, %s189
          %s192 = sshll.u32 %s190, 4
          %s193 = int_to_ptr.hbm [resolvable:$true] %s192
          %s194 = sshll.u32 %s182, 4
          %s195 = int_to_ptr.vmem [resolvable:$true] %s194
          %197 = dma.hbm_to_vmem [thread:$0]  %s193, 128, %s195, %s179
        $region20: #{mse_loss.1} parent=15 // pred_fallthru
          _
        // Predicated region
        $region21: #{mse_loss.1} parent=15 // pred_check
          %p198 = pneg %p88
        $region22: #{mse_loss.1} parent=15 // pred_check_branch
          %200 = sbr.rel (%p198) target = $region24
        $region23: #{mse_loss.1} parent=15 // pred_region
          %s201 = sand.u32 %s15, 1
          %s202 = scalar_lea.sflag [#allocation6], %s201
          %s203 = sand.u32 %s78, 1
          %s204 = smul.addr %s203, 4
          %s205 = scalar_lea.vmem [#allocation5], %s204
          %207 = vsyncadd %s202, 0
          %s208 = smul.addr %s23, 4
          %s209 = scalar_lea.hbm %s1, %s208
          %s211 = sshll.u32 %s209, 4
          %s212 = int_to_ptr.hbm [resolvable:$true] %s211
          %s213 = sshll.u32 %s205, 4
          %s214 = int_to_ptr.vmem [resolvable:$true] %s213
          %216 = dma.hbm_to_vmem [thread:$0]  %s212, 64, %s214, %s202
        $region24: #{mse_loss.1} parent=15 // pred_fallthru
          _
        // Predicated region
        $region25: #{mse_loss.1} parent=15 // pred_check
          %p217 = pneg %p122
        $region26: #{mse_loss.1} parent=15 // pred_check_branch
          %219 = sbr.rel (%p217) target = $region28
        $region27: #{mse_loss.1} parent=15 // pred_region
          %s220 = sand.u32 %s15, 1
          %s221 = scalar_lea.sflag [#allocation6], %s220
          %s222 = sand.u32 %s112, 1
          %s223 = scalar_lea.vmem [#allocation7], %s222
          %s224 = sadd.s32 %s22, %s24
          %p225 = scmp.lt.s32.totalorder %s224, 0
          %s226 = scalar_select %p225, %s224, 0
          %228 = vsyncadd %s221, 0
          %s229 = sadd.s32 %s226, %s23
          %s230 = scalar_lea.hbm %s2, %s229
          %s232 = sshll.u32 %s230, 4
          %s233 = int_to_ptr.hbm [resolvable:$true] %s232
          %s234 = sshll.u32 %s223, 4
          %s235 = int_to_ptr.vmem [resolvable:$true] %s234
          %237 = dma.hbm_to_vmem [thread:$0]  %s233, 16, %s235, %s221
        $region28: #{mse_loss.1} parent=15 // pred_fallthru
          _
      $region16: #{mse_loss.1} parent=5 // pred_fallthru
        _
      %p238 = scmp.le.s32.totalorder 1, %s15
      %p239 = scmp.lt.s32.totalorder %s15, 3
      %p240 = pnand %p238, %p239
      %p241 = pneg %p240
      // Predicated region
      $region29: #{mse_loss.1} parent=5 // pred_check
        _
      $region30: #{mse_loss.1} parent=5 // pred_check_branch
        %243 = sbr.rel (%p240) target = $region32
      $region31: #{mse_loss.1} parent=5 // pred_region
        %s244 = ssub.s32 %s15, 1
        %s245 = sand.u32 %s55, 1
        %s246 = scalar_lea.sflag [#allocation4], %s245
        %s247 = sand.u32 %s55, 1
        %s248 = smul.addr %s247, 8
        %s249 = scalar_lea.vmem [#allocation3], %s248
        // Predicated region
        $region33: #{mse_loss.1} parent=31 // pred_check
          %p250 = pneg %p68
        $region34: #{mse_loss.1} parent=31 // pred_check_branch
          %252 = sbr.rel (%p250) target = $region36
        $region35: #{mse_loss.1} parent=31 // pred_region
          %254 = dma.done %s246, 128
        $region36: #{mse_loss.1} parent=31 // pred_fallthru
          _
        %s255 = sand.u32 %s20, 1
        %s256 = scalar_lea.sflag [#allocation6], %s255
        %s257 = sand.u32 %s81, 1
        %s258 = smul.addr %s257, 4
        %s259 = scalar_lea.vmem [#allocation5], %s258
        // Predicated region
        $region37: #{mse_loss.1} parent=31 // pred_check
          %p260 = pneg %p94
        $region38: #{mse_loss.1} parent=31 // pred_check_branch
          %262 = sbr.rel (%p260) target = $region40
        $region39: #{mse_loss.1} parent=31 // pred_region
          %264 = dma.done %s256, 64
        $region40: #{mse_loss.1} parent=31 // pred_fallthru
          _
        %s265 = sand.u32 %s20, 1
        %s266 = scalar_lea.sflag [#allocation6], %s265
        %s267 = sand.u32 %s115, 1
        %s268 = scalar_lea.vmem [#allocation7], %s267
        // Predicated region
        $region41: #{mse_loss.1} parent=31 // pred_check
          %p269 = pneg %p128
        $region42: #{mse_loss.1} parent=31 // pred_check_branch
          %271 = sbr.rel (%p269) target = $region44
        $region43: #{mse_loss.1} parent=31 // pred_region
          %273 = dma.done %s266, 16
        $region44: #{mse_loss.1} parent=31 // pred_fallthru
          _
        %s274 = sand.u32 %s55, 1
        %s275 = scalar_lea.sflag [#allocation4], %s274
        %s276 = sand.u32 %s55, 1
        %s277 = smul.addr %s276, 8
        %s278 = scalar_lea.vmem [#allocation3], %s277
        %p279 = pneg %p68
        %p280 = pneg %p65
        %s281 = sand.u32 %s20, 1
        %s282 = scalar_lea.sflag [#allocation6], %s281
        %s283 = sand.u32 %s81, 1
        %s284 = smul.addr %s283, 4
        %s285 = scalar_lea.vmem [#allocation5], %s284
        %p286 = pneg %p94
        %p287 = pneg %p91
        %s288 = sand.u32 %s20, 1
        %s289 = scalar_lea.sflag [#allocation6], %s288
        %s290 = sand.u32 %s115, 1
        %s291 = scalar_lea.vmem [#allocation7], %s290
        %p292 = pneg %p128
        %p293 = pneg %p125
        %p294 = pneg %p156
        %p295 = pneg %p153
        %p296 = scmp.lt.s32.totalorder %s25, 0
        %s297 = scalar_select %p296, %s25, 0
        %p298 = scmp.lt.s32.totalorder %s26, 1
        %s299 = scalar_select %p298, %s26, 1
        %s300 = smul.addr %s297, 2
        %s301 = sadd.s32 %s299, %s300
        %s302 = scalar_lea.vmem %s3, %s301
        %s303 = sadd.s32 %s25, %s27
        %p304 = scmp.lt.s32.totalorder %s303, 0
        %s305 = scalar_select %p304, %s303, 0
        %s306 = sadd.s32 %s25, %s27
        %p307 = scmp.lt.s32.totalorder %s306, 0
        %s308 = scalar_select %p307, %s306, 0
        %p309 = scmp.lt.s32.totalorder %s25, 0
        %s310 = scalar_select %p309, %s25, 0
        %p311 = scmp.lt.s32.totalorder %s26, 1
        %s312 = scalar_select %p311, %s26, 1
        %s313 = smul.addr %s310, 2
        %s314 = sadd.s32 %s312, %s313
        %s315 = scalar_lea.vmem %s3, %s314
        %s316 = sadd.s32 %s25, %s27
        %s317 = smul.u32 %s316, 8
        %s318 = ssub.s32 8, %s317
        %v319 = vld [vmem:[%s259] sm:$0xf]
        %p320 = scmp.eq.s32.totalorder %s27, 0
        // Predicated region
        $region45: #{mse_loss.1} parent=31 // pred_check
          %p321 = pneg %p320
        $region46: #{mse_loss.1} parent=31 // pred_check_branch
          %323 = sbr.rel (%p321) target = $region48
        $region47: #{mse_loss.1} parent=31 // pred_region
          %324 = vst [vmem:[%s315] sm:$0x1] 0.0
          %v325 = vmul.f32 %v319, %v319
          %vm326 = vcmask 257024
          %v327 = vsel %vm326, %v325, 0.0
          %328 = vadd.xlane.f32.xlu0 %v327
          %v329 = vpop.xlane.xlu0 %328
          %vm330 = vcmask 3072
          %331 = vst.msk [vmem:[#allocation2] sm:$0xf] %vm330, %v329
        $region48: #{mse_loss.1} parent=31 // pred_fallthru
          _
        %v332 = vld [vmem:[%s249] sm:$0xff]
        %v333 = vld [vmem:[%s268] sm:$0x1]
        %v334 = vlaneseq
        %v335 = vshrl.u32 %v334, 7
        %v336 = vstv %s318
        %vm337 = vcmp.lt.s32.totalorder %v335, %v336
        %v338 = vsel %vm337, 1, 0
        %vm339 = vcmp.eq.s32.totalorder %v338, 1
        %v340 = vsel %vm339, %v332, 0.0
        %v341 = vlaneseq
        %v342 = vand.u32 %v341, 127
        %v343 = vperm.slane %v333, 0
        %vm344 = vcmp.eq.s32.totalorder %v343, %v335
        %vm345 = vcmp.lt.s32.totalorder %v342, %v336
        %v346 = vsel %vm345, 1, 0
        %vm347 = vcmp.eq.s32.totalorder %v346, 1
        %vm348 = vmand %vm344, %vm347
        %v349 = vsel %vm348, 1, 0
        %v350 = vcvt.s32.f32 %v349
        %v351 = vmul.f32 %v340, %v340
        %vm352 = vcmask 261120
        %v353 = vsel %vm352, %v351, 0.0
        %354 = vadd.xlane.f32.xlu0 %v353
        %v355 = vpop.xlane.xlu0 %354
        %v356 = vrot.slane %v355, 4
        %v357 = vadd.f32 %v355, %v356
        %v358 = vrot.slane %v357, 2
        %v359 = vadd.f32 %v357, %v358
        %v360 = vrot.slane %v359, 1
        %v361 = vadd.f32 %v359, %v360
        %s362 = vtos %v361
        %vm363 = vcmask 64512
        %v365 = vsel %vm363, %v350, 0
        %367 = vmatpush.msra.mxu0 0.0
        %368 = vmatpush.msra.mxu0 0.0
        %369 = vmatpush.msra.mxu0 0.0
        %370 = vmatpush.msra.mxu0 0.0
        %371 = vmatpush.msra.mxu0 0.0
        %372 = vmatpush.msra.mxu0 0.0
        %373 = vmatpush.msra.mxu0 0.0
        %374 = vmatpush.msra.mxu0 0.0
        %375 = vmatpush.msra.mxu0 0.0
        %376 = vmatpush.msra.mxu0 0.0
        %377 = vmatpush.msra.mxu0 0.0
        %378 = vmatpush.msra.mxu0 0.0
        %379 = vmatpush.msra.mxu0 0.0
        %380 = vmatpush.msra.mxu0 0.0
        %381 = vmatpush.msra.mxu0 0.0
        %v382 = vand.u32 %v340, 4294901760
        %383 = vmatpush.msra.mxu0 %v382
        %v384 = vand.u32 %v365, 4294901760
        %v385 = vsub.f32 %v365, %v384
        %v386 = vand.u32 %v385, 4294901760
        %v387 = vsub.f32 %v385, %v386
        %v388 = vand.u32 %v387, 4294901760
        %389 = vmatmul.f32.gmra.mxu0 %v388
        %v390 = vpop.f32.mrf.mxu0
        %v391 = vadd.f32 0.0, %v390
        %392 = vdwg.mxu0
        %393 = vmatpush.msra.mxu0 0.0
        %394 = vmatpush.msra.mxu0 0.0
        %395 = vmatpush.msra.mxu0 0.0
        %396 = vmatpush.msra.mxu0 0.0
        %397 = vmatpush.msra.mxu0 0.0
        %398 = vmatpush.msra.mxu0 0.0
        %399 = vmatpush.msra.mxu0 0.0
        %400 = vmatpush.msra.mxu0 0.0
        %401 = vmatpush.msra.mxu0 0.0
        %402 = vmatpush.msra.mxu0 0.0
        %403 = vmatpush.msra.mxu0 0.0
        %404 = vmatpush.msra.mxu0 0.0
        %405 = vmatpush.msra.mxu0 0.0
        %406 = vmatpush.msra.mxu0 0.0
        %407 = vmatpush.msra.mxu0 0.0
        %v408 = vand.u32 %v340, 4294901760
        %v409 = vsub.f32 %v340, %v408
        %v410 = vand.u32 %v409, 4294901760
        %v411 = vsub.f32 %v409, %v410
        %v412 = vand.u32 %v411, 4294901760
        %413 = vmatpush.msra.mxu0 %v412
        %v414 = vand.u32 %v365, 4294901760
        %415 = vmatmul.f32.gmra.mxu0 %v414
        %v416 = vpop.f32.mrf.mxu0
        %v417 = vadd.f32 %v391, %v416
        %418 = vdwg.mxu0
        %419 = vmatpush.msra.mxu0 0.0
        %420 = vmatpush.msra.mxu0 0.0
        %421 = vmatpush.msra.mxu0 0.0
        %422 = vmatpush.msra.mxu0 0.0
        %423 = vmatpush.msra.mxu0 0.0
        %424 = vmatpush.msra.mxu0 0.0
        %425 = vmatpush.msra.mxu0 0.0
        %426 = vmatpush.msra.mxu0 0.0
        %427 = vmatpush.msra.mxu0 0.0
        %428 = vmatpush.msra.mxu0 0.0
        %429 = vmatpush.msra.mxu0 0.0
        %430 = vmatpush.msra.mxu0 0.0
        %431 = vmatpush.msra.mxu0 0.0
        %432 = vmatpush.msra.mxu0 0.0
        %433 = vmatpush.msra.mxu0 0.0
        %v434 = vand.u32 %v340, 4294901760
        %v435 = vsub.f32 %v340, %v434
        %436 = vmatpush.msra.mxu0 %v435
        %v437 = vand.u32 %v365, 4294901760
        %v438 = vsub.f32 %v365, %v437
        %439 = vmatmul.f32.gmra.mxu0 %v438
        %v440 = vpop.f32.mrf.mxu0
        %v441 = vadd.f32 %v417, %v440
        %442 = vdwg.mxu0
        %443 = vmatpush.msra.mxu0 0.0
        %444 = vmatpush.msra.mxu0 0.0
        %445 = vmatpush.msra.mxu0 0.0
        %446 = vmatpush.msra.mxu0 0.0
        %447 = vmatpush.msra.mxu0 0.0
        %448 = vmatpush.msra.mxu0 0.0
        %449 = vmatpush.msra.mxu0 0.0
        %450 = vmatpush.msra.mxu0 0.0
        %451 = vmatpush.msra.mxu0 0.0
        %452 = vmatpush.msra.mxu0 0.0
        %453 = vmatpush.msra.mxu0 0.0
        %454 = vmatpush.msra.mxu0 0.0
        %455 = vmatpush.msra.mxu0 0.0
        %456 = vmatpush.msra.mxu0 0.0
        %457 = vmatpush.msra.mxu0 0.0
        %v458 = vand.u32 %v340, 4294901760
        %459 = vmatpush.msra.mxu0 %v458
        %v460 = vand.u32 %v365, 4294901760
        %v461 = vsub.f32 %v365, %v460
        %v462 = vand.u32 %v461, 4294901760
        %463 = vmatmul.f32.gmra.mxu0 %v462
        %v464 = vpop.f32.mrf.mxu0
        %v465 = vadd.f32 %v441, %v464
        %466 = vdwg.mxu0
        %467 = vmatpush.msra.mxu0 0.0
        %468 = vmatpush.msra.mxu0 0.0
        %469 = vmatpush.msra.mxu0 0.0
        %470 = vmatpush.msra.mxu0 0.0
        %471 = vmatpush.msra.mxu0 0.0
        %472 = vmatpush.msra.mxu0 0.0
        %473 = vmatpush.msra.mxu0 0.0
        %474 = vmatpush.msra.mxu0 0.0
        %475 = vmatpush.msra.mxu0 0.0
        %476 = vmatpush.msra.mxu0 0.0
        %477 = vmatpush.msra.mxu0 0.0
        %478 = vmatpush.msra.mxu0 0.0
        %479 = vmatpush.msra.mxu0 0.0
        %480 = vmatpush.msra.mxu0 0.0
        %481 = vmatpush.msra.mxu0 0.0
        %v482 = vand.u32 %v340, 4294901760
        %v483 = vsub.f32 %v340, %v482
        %v484 = vand.u32 %v483, 4294901760
        %485 = vmatpush.msra.mxu0 %v484
        %v486 = vand.u32 %v365, 4294901760
        %487 = vmatmul.f32.gmra.mxu0 %v486
        %v488 = vpop.f32.mrf.mxu0
        %v489 = vadd.f32 %v465, %v488
        %490 = vdwg.mxu0
        %491 = vmatpush.msra.mxu0 0.0
        %492 = vmatpush.msra.mxu0 0.0
        %493 = vmatpush.msra.mxu0 0.0
        %494 = vmatpush.msra.mxu0 0.0
        %495 = vmatpush.msra.mxu0 0.0
        %496 = vmatpush.msra.mxu0 0.0
        %497 = vmatpush.msra.mxu0 0.0
        %498 = vmatpush.msra.mxu0 0.0
        %499 = vmatpush.msra.mxu0 0.0
        %500 = vmatpush.msra.mxu0 0.0
        %501 = vmatpush.msra.mxu0 0.0
        %502 = vmatpush.msra.mxu0 0.0
        %503 = vmatpush.msra.mxu0 0.0
        %504 = vmatpush.msra.mxu0 0.0
        %505 = vmatpush.msra.mxu0 0.0
        %v506 = vand.u32 %v340, 4294901760
        %507 = vmatpush.msra.mxu0 %v506
        %v508 = vand.u32 %v365, 4294901760
        %509 = vmatmul.f32.gmra.mxu0 %v508
        %v510 = vpop.f32.mrf.mxu0
        %v511 = vadd.f32 %v489, %v510
        %512 = vdwg.mxu0
        %v513 = vmul.f32 %v511, %v319
        %vm514 = vcmask 257024
        %v515 = vsel %vm514, %v513, 0.0
        %516 = vadd.xlane.f32.xlu0 %v515
        %v517 = vpop.xlane.xlu0 %516
        %v518 = vrot.slane %v517, 4
        %v519 = vadd.f32 %v517, %v518
        %v520 = vrot.slane %v519, 2
        %v521 = vadd.f32 %v519, %v520
        %v522 = vrot.slane %v521, 1
        %v523 = vadd.f32 %v521, %v522
        %s524 = vtos %v523
        %vm525 = vcmask 60416
        %v526 = vsel %vm525, %v350, 0.0
        %527 = vadd.xlane.f32.xlu0 %v526
        %v528 = vpop.xlane.xlu0 %527
        %v529 = vld [vmem:[#allocation2] sm:$0xf]
        %v530 = vmul.f32 %v528, %v529
        %vm531 = vcmask 3072
        %v532 = vsel %vm531, %v530, 0.0
        %533 = vadd.xlane.f32.xlu0 %v532
        %v534 = vpop.xlane.xlu0 %533
        %v535 = vrot.slane %v534, 4
        %v536 = vadd.f32 %v534, %v535
        %v537 = vrot.slane %v536, 2
        %v538 = vadd.f32 %v536, %v537
        %v539 = vrot.slane %v538, 1
        %v540 = vadd.f32 %v538, %v539
        %s541 = vtos %v540
        %v542 = vld [vmem:[%s315] sm:$0x1]
        %s543 = smul.f32 %s524, 2.0
        %s544 = ssub.f32 %s362, %s543
        %s545 = sadd.f32 %s544, %s541
        %v546 = vstv %s545
        %v547 = vadd.f32 %v542, %v546
        %548 = vst [vmem:[%s315] sm:$0x1] %v547
        %p549 = scmp.lt.s32.totalorder %s25, 0
        %s550 = scalar_select %p549, %s25, 0
        %p551 = scmp.lt.s32.totalorder %s26, 1
        %s552 = scalar_select %p551, %s26, 1
        %s553 = smul.addr %s550, 2
        %s554 = sadd.s32 %s552, %s553
        %s555 = scalar_lea.vmem %s3, %s554
        // Predicated region
        $region49: #{mse_loss.1} parent=31 // pred_check
          %p556 = pneg %p153
        $region50: #{mse_loss.1} parent=31 // pred_check_branch
          %558 = sbr.rel (%p556) target = $region52
        $region51: #{mse_loss.1} parent=31 // pred_region
          _
        $region52: #{mse_loss.1} parent=31 // pred_fallthru
          _
      $region32: #{mse_loss.1} parent=5 // pred_fallthru
        _
      %p559 = scmp.le.s32.totalorder 2, %s15
      // Predicated region
      $region53: #{mse_loss.1} parent=5 // pred_check
        %p560 = pneg %p559
      $region54: #{mse_loss.1} parent=5 // pred_check_branch
        %562 = sbr.rel (%p560) target = $region56
      $region55: #{mse_loss.1} parent=5 // pred_region
        %s563 = ssub.s32 %s15, 2
        // Predicated region
        $region57: #{mse_loss.1} parent=55 // pred_check
          %p564 = pneg %p159
        $region58: #{mse_loss.1} parent=55 // pred_check_branch
          %566 = sbr.rel (%p564) target = $region60
        $region59: #{mse_loss.1} parent=55 // pred_region
          %p567 = scmp.lt.s32.totalorder %s28, 0
          %s568 = scalar_select %p567, %s28, 0
          %p569 = scmp.lt.s32.totalorder %s29, 1
          %s570 = scalar_select %p569, %s29, 1
          %s571 = smul.addr %s568, 2
          %s572 = sadd.s32 %s570, %s571
          %s573 = scalar_lea.vmem %s3, %s572
        $region60: #{mse_loss.1} parent=55 // pred_fallthru
          _
      $region56: #{mse_loss.1} parent=5 // pred_fallthru
        _
    $region6: #{mse_loss.1} parent=1 // loop_footer
      %s19 = sadd.s32 1, %s15
    $region7: #{mse_loss.1} parent=1 // loop_footer_branch
      %14 = sbr.rel target = $region3
    $region8: #{mse_loss.1} parent=1 // loop_exit
      _
    %574 = vsyncpa [#allocation4], 1
    %s575 = scalar_lea.sflag [#allocation4], 1
    %576 = vsyncpa %s575, 1
    %577 = vsyncpa [#allocation6], 1
    %s578 = scalar_lea.sflag [#allocation6], 1
    %579 = vsyncpa %s578, 1

</llo_original>
